<compile_context>
chip_gen: v7x
topology: tpu7x:2x2x1
jax: 0.10.0
libtpu: 0.0.40
codegen_flags: <defaults>
</compile_context>

<pallas_src>
import functools

import jax
import jax.numpy as jnp
from jax.experimental import pallas as pl
from jax.experimental.pallas import tpu as pltpu


def _ce_kernel(logits_ref, targets_ref, loss_ref,
               m_scr, l_scr, t_scr, *, num_classes):
    """Online-softmax cross entropy over one (TILE_N, TILE_C) logits block."""
    ci = pl.program_id(1)
    num_c_tiles = pl.num_programs(1)

    @pl.when(ci == 0)
    def _init():
        m_scr[...] = jnp.full_like(m_scr, -jnp.inf)   # running row max
        l_scr[...] = jnp.zeros_like(l_scr)            # running sum(exp(x - m))
        t_scr[...] = jnp.zeros_like(t_scr)            # running target logit

    x = logits_ref[...].astype(jnp.float32)           # (TN, TC), cast in-register
    tn, tc = x.shape

    # Global column ids for this C tile; mask padded tail columns with -inf.
    col = jax.lax.broadcasted_iota(jnp.int32, (tn, tc), 1) + ci * tc
    valid = col < num_classes
    x = jnp.where(valid, x, -jnp.inf)

    # Gather target logit via one-hot mask (target lives in exactly one C tile).
    tgt = targets_ref[...]                             # (TN, 1) int32
    hit = (col == tgt) & valid
    t_scr[...] += jnp.sum(jnp.where(hit, x, 0.0), axis=-1, keepdims=True)

    # Online logsumexp update.
    m_prev = m_scr[...]
    m_new = jnp.maximum(m_prev, jnp.max(x, axis=-1, keepdims=True))
    l_scr[...] = (l_scr[...] * jnp.exp(m_prev - m_new)
                  + jnp.sum(jnp.exp(x - m_new), axis=-1, keepdims=True))
    m_scr[...] = m_new

    @pl.when(ci == num_c_tiles - 1)
    def _finalize():
        lse = m_scr[...] + jnp.log(l_scr[...])         # (TN, 1)
        loss_ref[...] = lse - t_scr[...]               # per-example loss


def cross_entropy_loss(predictions, targets, *, tile_n=256, tile_c=2048):
    """predictions: (N, C) float logits (any float dtype); targets: (N,) ints."""
    n, c = predictions.shape
    # Full-extent tiles for small dims; otherwise (8,128)-aligned tiles sized so
    # double-buffered f32 blocks stay well under v7x's 64 MiB physical VMEM.
    tile_n = n if n <= tile_n else tile_n              # 256 is a multiple of 8
    tile_c = c if c <= tile_c else tile_c              # 2048 is a multiple of 128

    targets_2d = targets.astype(jnp.int32).reshape(n, 1)
    grid = (pl.cdiv(n, tile_n), pl.cdiv(c, tile_c))

    per_example = pl.pallas_call(
        functools.partial(_ce_kernel, num_classes=c),
        out_shape=jax.ShapeDtypeStruct((n, 1), jnp.float32),
        grid_spec=pltpu.PrefetchScalarGridSpec(
            num_scalar_prefetch=0,
            grid=grid,
            in_specs=[
                pl.BlockSpec((tile_n, tile_c), lambda i, ci: (i, ci)),
                pl.BlockSpec((tile_n, 1), lambda i, ci: (i, 0)),
            ],
            out_specs=pl.BlockSpec((tile_n, 1), lambda i, ci: (i, 0)),
            scratch_shapes=[
                pltpu.VMEM((tile_n, 1), jnp.float32),   # running max m
                pltpu.VMEM((tile_n, 1), jnp.float32),   # running sum l
                pltpu.VMEM((tile_n, 1), jnp.float32),   # target logit
            ],
        ),
        compiler_params=pltpu.CompilerParams(
            dimension_semantics=("parallel", "arbitrary"),
            vmem_limit_bytes=32 * 1024 * 1024,
        ),
    )(predictions, targets_2d)

    # Mean over the TRUE batch size (padded tail rows never reach the output).
    return jnp.sum(per_example) / jnp.float32(n)


def _reference_ce(predictions, targets):
    logp = jax.nn.log_softmax(predictions.astype(jnp.float32), axis=-1)
    n = predictions.shape[0]
    return -jnp.mean(logp[jnp.arange(n), targets])


if __name__ == "__main__":
    key = jax.random.PRNGKey(0)
    k_pred, k_tgt, k_pred2, k_tgt2 = jax.random.split(key, 4)

    # Case 1: small shapes consistent with the module (batch=8, classes=32).
    N, C = 8, 32
    predictions = jax.random.normal(k_pred, (N, C), dtype=jnp.float32)
    targets = jax.random.randint(k_tgt, (N,), 0, C, dtype=jnp.int32)

    loss = jax.block_until_ready(cross_entropy_loss(predictions, targets))
    ref = _reference_ce(predictions, targets)
    assert jnp.allclose(loss, ref, rtol=1e-5, atol=1e-5), (loss, ref)

    # Case 2: exercise the tiled path (multi-tile grid + N/C tails) with small
    # explicit tiles: N=20 (8*2+4), C=300 (128*2+44) -> grid (3, 3).
    N2, C2 = 20, 300
    predictions2 = jax.random.normal(k_pred2, (N2, C2), dtype=jnp.float32)
    targets2 = jax.random.randint(k_tgt2, (N2,), 0, C2, dtype=jnp.int32)

    loss2 = jax.block_until_ready(
        cross_entropy_loss(predictions2, targets2, tile_n=8, tile_c=128))
    ref2 = _reference_ce(predictions2, targets2)
    assert jnp.allclose(loss2, ref2, rtol=1e-5, atol=1e-5), (loss2, ref2)

    print("KERNEL_OK")
</pallas_src>

<mosaic_0001>
module attributes {stable_mosaic.version = 11 : i64} {
  func.func @_ce_kernel(%arg0: i32, %arg1: i32, %arg2: memref<8x32xf32, #tpu.memory_space<vmem>>, %arg3: memref<8x1xi32, #tpu.memory_space<vmem>>, %arg4: memref<8x1xf32, #tpu.memory_space<vmem>>, %arg5: memref<8x1xf32, #tpu.memory_space<vmem>>, %arg6: memref<8x1xf32, #tpu.memory_space<vmem>>, %arg7: memref<8x1xf32, #tpu.memory_space<vmem>>) attributes {dimension_semantics = [#tpu.dimension_semantics<parallel>, #tpu.dimension_semantics<arbitrary>], iteration_bounds = array<i64: 1, 1>, scalar_prefetch = 0 : i64, scratch_operands = 3 : i64, tpu.core_type = #tpu.core_type<tc>, window_params = [{transform_indices = @transform_0, window_bounds = array<i64: 8, 32>}, {transform_indices = @transform_1, window_bounds = array<i64: 8, 1>}, {transform_indices = @transform_2, window_bounds = array<i64: 8, 1>}]} {
    %c0_i32 = arith.constant 0 : i32
    %0 = arith.cmpi eq, %arg1, %c0_i32 : i32
    %1 = arith.extui %0 : i1 to i32
    %c0_i32_0 = arith.constant 0 : i32
    %2 = arith.cmpi ne, %1, %c0_i32_0 : i32
    scf.if %2 {
      %cst_23 = arith.constant 0xFF800000 : f32
      %42 = vector.broadcast %cst_23 : f32 to vector<8x1xf32>
      %c0_24 = arith.constant 0 : index
      %c0_25 = arith.constant 0 : index
      %43 = vector.load %arg5[%c0_24, %c0_25] : memref<8x1xf32, #tpu.memory_space<vmem>>, vector<8x1xf32>
      tpu.vector_store %arg5[%c0_24, %c0_25], %42 {strides = array<i32>} : memref<8x1xf32, #tpu.memory_space<vmem>>, vector<8x1xf32>,
      %cst_26 = arith.constant 0.000000e+00 : f32
      %44 = vector.broadcast %cst_26 : f32 to vector<8x1xf32>
      %c0_27 = arith.constant 0 : index
      %c0_28 = arith.constant 0 : index
      %45 = vector.load %arg6[%c0_27, %c0_28] : memref<8x1xf32, #tpu.memory_space<vmem>>, vector<8x1xf32>
      tpu.vector_store %arg6[%c0_27, %c0_28], %44 {strides = array<i32>} : memref<8x1xf32, #tpu.memory_space<vmem>>, vector<8x1xf32>,
      %cst_29 = arith.constant 0.000000e+00 : f32
      %46 = vector.broadcast %cst_29 : f32 to vector<8x1xf32>
      %c0_30 = arith.constant 0 : index
      %c0_31 = arith.constant 0 : index
      %47 = vector.load %arg7[%c0_30, %c0_31] : memref<8x1xf32, #tpu.memory_space<vmem>>, vector<8x1xf32>
      tpu.vector_store %arg7[%c0_30, %c0_31], %46 {strides = array<i32>} : memref<8x1xf32, #tpu.memory_space<vmem>>, vector<8x1xf32>,
    } else {
    }
    %c0 = arith.constant 0 : index
    %c0_1 = arith.constant 0 : index
    %3 = vector.load %arg2[%c0, %c0_1] : memref<8x32xf32, #tpu.memory_space<vmem>>, vector<8x32xf32>
    %4 = tpu.iota {dimensions = array<i32: 1>} : vector<8x32xi32>
    %c32_i32 = arith.constant 32 : i32
    %5 = arith.muli %arg1, %c32_i32 : i32
    %6 = vector.broadcast %5 : i32 to vector<8x32xi32>
    %7 = arith.addi %4, %6 : vector<8x32xi32>
    %c32_i32_2 = arith.constant 32 : i32
    %8 = vector.broadcast %c32_i32_2 : i32 to vector<8x32xi32>
    %9 = arith.cmpi slt, %7, %8 : vector<8x32xi32>
    %cst = arith.constant 0xFF800000 : f32
    %10 = vector.broadcast %cst : f32 to vector<8x32xf32>
    %11 = arith.select %9, %3, %10 : vector<8x32xi1>, vector<8x32xf32>
    %c0_3 = arith.constant 0 : index
    %c0_4 = arith.constant 0 : index
    %12 = vector.load %arg3[%c0_3, %c0_4] : memref<8x1xi32, #tpu.memory_space<vmem>>, vector<8x1xi32>
    %13 = vector.broadcast %12 : vector<8x1xi32> to vector<8x32xi32>
    %14 = arith.cmpi eq, %7, %13 : vector<8x32xi32>
    %15 = arith.andi %14, %9 : vector<8x32xi1>
    %c0_5 = arith.constant 0 : index
    %c0_6 = arith.constant 0 : index
    %16 = vector.load %arg7[%c0_5, %c0_6] : memref<8x1xf32, #tpu.memory_space<vmem>>, vector<8x1xf32>
    %cst_7 = arith.constant 0.000000e+00 : f32
    %17 = vector.broadcast %cst_7 : f32 to vector<8x32xf32>
    %18 = arith.select %15, %11, %17 : vector<8x32xi1>, vector<8x32xf32>
    %cst_8 = arith.constant dense<0.000000e+00> : vector<8xf32>
    %19 = vector.multi_reduction <add>, %18, %cst_8 [1] : vector<8x32xf32> to vector<8xf32>
    %20 = vector.shape_cast %19 : vector<8xf32> to vector<8x1xf32>
    %21 = arith.addf %16, %20 : vector<8x1xf32>
    %c0_9 = arith.constant 0 : index
    %c0_10 = arith.constant 0 : index
    %22 = vector.load %arg7[%c0_9, %c0_10] : memref<8x1xf32, #tpu.memory_space<vmem>>, vector<8x1xf32>
    tpu.vector_store %arg7[%c0_9, %c0_10], %21 {strides = array<i32>} : memref<8x1xf32, #tpu.memory_space<vmem>>, vector<8x1xf32>,
    %c0_11 = arith.constant 0 : index
    %c0_12 = arith.constant 0 : index
    %23 = vector.load %arg5[%c0_11, %c0_12] : memref<8x1xf32, #tpu.memory_space<vmem>>, vector<8x1xf32>
    %cst_13 = arith.constant dense<0xFF800000> : vector<8xf32>
    %24 = vector.multi_reduction <maximumf>, %11, %cst_13 [1] : vector<8x32xf32> to vector<8xf32>
    %25 = vector.shape_cast %24 : vector<8xf32> to vector<8x1xf32>
    %26 = arith.maximumf %23, %25 : vector<8x1xf32>
    %c0_14 = arith.constant 0 : index
    %c0_15 = arith.constant 0 : index
    %27 = vector.load %arg6[%c0_14, %c0_15] : memref<8x1xf32, #tpu.memory_space<vmem>>, vector<8x1xf32>
    %28 = arith.subf %23, %26 : vector<8x1xf32>
    %29 = math.exp %28 : vector<8x1xf32>
    %30 = arith.mulf %27, %29 : vector<8x1xf32>
    %31 = vector.broadcast %26 : vector<8x1xf32> to vector<8x32xf32>
    %32 = arith.subf %11, %31 : vector<8x32xf32>
    %33 = math.exp %32 : vector<8x32xf32>
    %cst_16 = arith.constant dense<0.000000e+00> : vector<8xf32>
    %34 = vector.multi_reduction <add>, %33, %cst_16 [1] : vector<8x32xf32> to vector<8xf32>
    %35 = vector.shape_cast %34 : vector<8xf32> to vector<8x1xf32>
    %36 = arith.addf %30, %35 : vector<8x1xf32>
    %c0_17 = arith.constant 0 : index
    %c0_18 = arith.constant 0 : index
    %37 = vector.load %arg6[%c0_17, %c0_18] : memref<8x1xf32, #tpu.memory_space<vmem>>, vector<8x1xf32>
    tpu.vector_store %arg6[%c0_17, %c0_18], %36 {strides = array<i32>} : memref<8x1xf32, #tpu.memory_space<vmem>>, vector<8x1xf32>,
    %c0_19 = arith.constant 0 : index
    %c0_20 = arith.constant 0 : index
    %38 = vector.load %arg5[%c0_19, %c0_20] : memref<8x1xf32, #tpu.memory_space<vmem>>, vector<8x1xf32>
    tpu.vector_store %arg5[%c0_19, %c0_20], %26 {strides = array<i32>} : memref<8x1xf32, #tpu.memory_space<vmem>>, vector<8x1xf32>,
    %c0_i32_21 = arith.constant 0 : i32
    %39 = arith.cmpi eq, %arg1, %c0_i32_21 : i32
    %40 = arith.extui %39 : i1 to i32
    %c0_i32_22 = arith.constant 0 : i32
    %41 = arith.cmpi ne, %40, %c0_i32_22 : i32
    scf.if %41 {
      %c0_23 = arith.constant 0 : index
      %c0_24 = arith.constant 0 : index
      %42 = vector.load %arg5[%c0_23, %c0_24] : memref<8x1xf32, #tpu.memory_space<vmem>>, vector<8x1xf32>
      %c0_25 = arith.constant 0 : index
      %c0_26 = arith.constant 0 : index
      %43 = vector.load %arg6[%c0_25, %c0_26] : memref<8x1xf32, #tpu.memory_space<vmem>>, vector<8x1xf32>
      %44 = math.log %43 : vector<8x1xf32>
      %45 = arith.addf %42, %44 : vector<8x1xf32>
      %c0_27 = arith.constant 0 : index
      %c0_28 = arith.constant 0 : index
      %46 = vector.load %arg7[%c0_27, %c0_28] : memref<8x1xf32, #tpu.memory_space<vmem>>, vector<8x1xf32>
      %47 = arith.subf %45, %46 : vector<8x1xf32>
      %c0_29 = arith.constant 0 : index
      %c0_30 = arith.constant 0 : index
      %48 = vector.load %arg4[%c0_29, %c0_30] : memref<8x1xf32, #tpu.memory_space<vmem>>, vector<8x1xf32>
      tpu.vector_store %arg4[%c0_29, %c0_30], %47 {strides = array<i32>} : memref<8x1xf32, #tpu.memory_space<vmem>>, vector<8x1xf32>,
    } else {
    }
    return
  }
  func.func @transform_0(%arg0: i32, %arg1: i32) -> (i32, i32) {
    %c0_i32 = arith.constant 0 : i32
    return %arg0, %arg1 : i32, i32
  }
  func.func @transform_1(%arg0: i32, %arg1: i32) -> (i32, i32) {
    %c0_i32 = arith.constant 0 : i32
    %c0_i32_0 = arith.constant 0 : i32
    return %arg0, %c0_i32 : i32, i32
  }
  func.func @transform_2(%arg0: i32, %arg1: i32) -> (i32, i32) {
    %c0_i32 = arith.constant 0 : i32
    %c0_i32_0 = arith.constant 0 : i32
    return %arg0, %c0_i32 : i32, i32
  }
}

</mosaic_0001>

<llo_original>
// kernel: tpu_custom_call.1
$region0: #{tpu_custom_call.1}
  #allocation0 [shape = 'u32[]', space=smem, size = 0x4, offset = 0x4, fixed_abs, tag = 'smem constant byte address 0x4 - core index']
  #allocation1 [shape = 'u32[144,128]{1,0:T(1,128)}', space=vmem, size = 0x12000, scoped, tag = 'internal scratch']
  #allocation2 [shape = 'f32[8,1]{1,0:T(8,128)}', space=vmem, size = 0x1000, scoped, tag = 'scratch operand']
  #allocation3 [shape = 'f32[8,1]{1,0:T(8,128)}', space=vmem, size = 0x1000, scoped, tag = 'scratch operand']
  #allocation4 [shape = 'f32[8,1]{1,0:T(8,128)}', space=vmem, size = 0x1000, scoped, tag = 'scratch operand']
  %s0 = inlined_call_operand.vmem [shape: f32[8,32], index: 0, kind: input, shape index: {}]
  %s1 = inlined_call_operand.vmem [shape: s32[8,1], index: 1, kind: input, shape index: {}]
  %s2 = inlined_call_operand.vmem [shape: f32[8,1], index: 2, kind: output, shape index: {}]
  %s3 = sld [smem:[#allocation0]]
  $region26: #{tpu_custom_call.1} parent=0
    _
  %s5 = ssub.s32 1, %s3
  %s6 = scalar_select 0, %s5, %s3
  // Predicated region
  $region2: #{tpu_custom_call.1} parent=0 // pred_check
    _
  $region3: #{tpu_custom_call.1} parent=0 // pred_check_branch
    %8 = sbr.rel (0) target = $region5
  $region4: #{tpu_custom_call.1} parent=0 // pred_region
    _
  $region5: #{tpu_custom_call.1} parent=0 // pred_fallthru
    _
  // Predicated region
  $region6: #{tpu_custom_call.1} parent=0 // pred_check
    _
  $region7: #{tpu_custom_call.1} parent=0 // pred_check_branch
    %10 = sbr.rel (0) target = $region9
  $region8: #{tpu_custom_call.1} parent=0 // pred_region
    _
  $region9: #{tpu_custom_call.1} parent=0 // pred_fallthru
    _
  %p11 = scmp.eq.s32.totalorder 0, 0
  // Predicated region
  $region10: #{tpu_custom_call.1} parent=0 // pred_check
    %p12 = pneg %p11
  $region11: #{tpu_custom_call.1} parent=0 // pred_check_branch
    %14 = sbr.rel (%p12) target = $region13
  $region12: #{tpu_custom_call.1} parent=0 // pred_region
    %vm15 = vcmask 7168
    %16 = vst.msk [vmem:[#allocation2] sm:$0xff] %vm15, -inf
    %17 = vst.msk [vmem:[#allocation3] sm:$0xff] %vm15, 0.0
    %18 = vst.msk [vmem:[#allocation4] sm:$0xff] %vm15, 0.0
  $region13: #{tpu_custom_call.1} parent=0 // pred_fallthru
    _
  %v19 = vld [vmem:[%s0] sm:$0xff]
  %v20 = vlaneseq
  %v21 = vand.u32 %v20, 127
  %s22 = smul.u32 0, 32
  %v23 = vstv %s22
  %v24 = vadd.s32 %v21, %v23
  %vm25 = vcmp.lt.s32.totalorder %v24, 32
  %v26 = vsel %vm25, %v19, -inf
  %v27 = vld [vmem:[%s1] sm:$0xff]
  %28 = vset.pattern.permute.xlu0 0
  %29 = vperm.xlu0 %28, %v27
  %v30 = vpop.permute.xlu0 %29
  %vm31 = vcmp.eq.s32.totalorder %v24, %v30
  %vm32 = vmand %vm31, %vm25
  %v33 = vld [vmem:[#allocation4] sm:$0xff]
  %v34 = vsel %vm32, %v26, 0.0
  %vm35 = vcmask 261120
  %v36 = vsel %vm35, %v34, 0.0
  %37 = vadd.xlane.f32.xlu0 %v36
  %v38 = vpop.xlane.xlu0 %37
  %v39 = vadd.f32 %v33, %v38
  %vm40 = vcmask 7168
  %41 = vst.msk [vmem:[#allocation4] sm:$0xff] %vm40, %v39
  %v42 = vld [vmem:[#allocation2] sm:$0xff]
  %v43 = vsel %vm35, %v26, -inf
  %44 = vmax.xlane.f32.xlu0 %v43
  %v45 = vpop.xlane.xlu0 %44
  %v46 = vmax.f32 %v42, %v45
  %v47 = vld [vmem:[#allocation3] sm:$0xff]
  %v48 = vsub.f32 %v42, %v46
  %v49 = vmul.f32 %v48, 1.442695
  %v50 = vpow.pop %v49
  %v51 = vmul.f32 %v47, %v50
  %53 = vset.pattern.permute.xlu0 0
  %54 = vperm.xlu0 %53, %v46
  %v55 = vpop.permute.xlu0 %54
  %v57 = vsub.f32 %v26, %v55
  %v58 = vmul.f32 %v57, 1.442695
  %v59 = vpow.pop %v58
  %v60 = vsel %vm35, %v59, 0.0
  %61 = vadd.xlane.f32.xlu0 %v60
  %v62 = vpop.xlane.xlu0 %61
  %v63 = vadd.f32 %v51, %v62
  %64 = vst.msk [vmem:[#allocation3] sm:$0xff] %vm40, %v63
  %65 = vst.msk [vmem:[#allocation2] sm:$0xff] %vm40, %v46
  // Predicated region
  $region14: #{tpu_custom_call.1} parent=0 // pred_check
    %p66 = pneg %p11
  $region15: #{tpu_custom_call.1} parent=0 // pred_check_branch
    %68 = sbr.rel (%p66) target = $region17
  $region16: #{tpu_custom_call.1} parent=0 // pred_region
    %v69 = vld [vmem:[#allocation2] sm:$0xff]
    %v70 = vld [vmem:[#allocation3] sm:$0xff]
    %v71 = vlog2.pop %v70
    %v72 = vmul.f32 %v71, 0.6931472
    %v73 = vadd.f32 %v69, %v72
    %v74 = vld [vmem:[#allocation4] sm:$0xff]
    %v75 = vsub.f32 %v73, %v74
    %76 = vst.msk [vmem:[%s2] sm:$0xff] %vm40, %v75
  $region17: #{tpu_custom_call.1} parent=0 // pred_fallthru
    _
  // Predicated region
  $region18: #{tpu_custom_call.1} parent=0 // pred_check
    _
  $region19: #{tpu_custom_call.1} parent=0 // pred_check_branch
    %78 = sbr.rel (0) target = $region21
  $region20: #{tpu_custom_call.1} parent=0 // pred_region
    _
  $region21: #{tpu_custom_call.1} parent=0 // pred_fallthru
    _
  // Predicated region
  $region22: #{tpu_custom_call.1} parent=0 // pred_check
    _
  $region23: #{tpu_custom_call.1} parent=0 // pred_check_branch
    %80 = sbr.rel (0) target = $region25
  $region24: #{tpu_custom_call.1} parent=0 // pred_region
    _
  $region25: #{tpu_custom_call.1} parent=0 // pred_fallthru
    _

</llo_original>
